<compile_context>
chip_gen: v7x
topology: tpu7x:2x2x1
jax: 0.10.0
libtpu: 0.0.40
codegen_flags: <defaults>
</compile_context>

<pallas_src>
import functools

import jax
import jax.numpy as jnp
from jax.experimental import pallas as pl
from jax.experimental.pallas import tpu as pltpu


def _round_up(a, b):
    return ((a + b - 1) // b) * b


def _sublane_multiple(dtype):
    itemsize = jnp.dtype(dtype).itemsize
    return {4: 8, 2: 16, 1: 32}.get(itemsize, 8)


def _vmem_capacity_bytes():
    try:
        return int(pltpu.get_tpu_info().vmem_capacity_bytes)
    except Exception:
        return None


def _choose_th(H, tile_h):
    """Largest 128-multiple divisor of H that is <= tile_h (min 128)."""
    if H % 128 != 0:
        # Odd hidden size: only sane for tiny H; use the whole thing.
        return H
    tile_h = max(128, (int(tile_h) // 128) * 128)
    best = 128
    d = 128
    limit = min(H, tile_h)
    while d <= limit:
        if H % d == 0:
            best = d
        d += 128
    return best


def _vmem_estimate_bytes(tm, th, C, in_bytes, out_bytes):
    """Rough double-buffered working-set estimate for one grid step."""
    db = 2  # default double buffering
    x_b = db * tm * C * in_bytes
    w_b = db * (2 * C * th + th * C) * in_bytes           # W1, W2, Wp slabs
    b_b = db * (2 * th + C) * in_bytes                    # b1, b2, bp rows
    o_b = db * tm * C * out_bytes
    acc_b = tm * C * 4                                    # f32 scratch
    return x_b + w_b + b_b + o_b + acc_b


def swiglu_kernel(x_ref, w1_ref, b1_ref, w2_ref, b2_ref, wp_ref, bp_ref,
                  o_ref, acc_ref, *, mxu_dtype=None):
    h_idx = pl.program_id(1)

    @pl.when(h_idx == 0)
    def _():
        # Seed the accumulator with the c_proj bias (drops the epilogue add).
        acc_ref[...] = jnp.broadcast_to(
            bp_ref[...].astype(jnp.float32), acc_ref.shape)

    x = x_ref[...]
    w1 = w1_ref[...]
    w2 = w2_ref[...]
    wp = wp_ref[...]
    if mxu_dtype is not None:
        # Optional precision trade: v6e/v7x MXUs are bf16-native.
        x = x.astype(mxu_dtype)
        w1 = w1.astype(mxu_dtype)
        w2 = w2.astype(mxu_dtype)
        wp = wp.astype(mxu_dtype)

    # branch 1: ln_1(x) on this H slab (f32 accumulation on the MXU)
    h1 = jnp.dot(x, w1, preferred_element_type=jnp.float32)
    h1 = h1 + b1_ref[...].astype(jnp.float32)
    # branch 2: silu(ln_2(x)) on this H slab
    h2 = jnp.dot(x, w2, preferred_element_type=jnp.float32)
    h2 = h2 + b2_ref[...].astype(jnp.float32)
    # elementwise gating kept in f32 (VPU/EUP; v5e has no bf16 VPU)
    g = h1 * (h2 * jax.nn.sigmoid(h2))                    # (tm, th) f32
    # partial c_proj contribution of this H slab.
    # NOTE: in the bf16 path g is rounded to bf16 here before the MXU -- one
    # extra rounding step versus a pure-f32 reference (covered by test tol).
    acc_ref[...] += jnp.dot(g.astype(wp.dtype), wp,
                            preferred_element_type=jnp.float32)

    @pl.when(h_idx == pl.num_programs(1) - 1)
    def _():
        o_ref[...] = acc_ref[...].astype(o_ref.dtype)


def expert_moe_forward(x, w1, b1, w2, b2, wp, bp, *,
                       tile_m=None, tile_h=None,
                       vmem_limit_bytes=None, mxu_dtype=None):
    """x: (B, T, C). Weights stored as (in, out). Returns (B, T, C)."""
    B, T, C = x.shape
    H = w1.shape[1]
    M = B * T

    in_bytes = jnp.dtype(x.dtype).itemsize
    sub = _sublane_multiple(x.dtype)

    # --- VMEM budget: generation-aware, 8 MiB headroom below physical ---
    if vmem_limit_bytes is None:
        cap = _vmem_capacity_bytes()
        if cap is not None:
            vmem_limit_bytes = max(32 << 20, min(cap - (8 << 20), 100 << 20))
        else:
            vmem_limit_bytes = 48 << 20

    big_vmem = vmem_limit_bytes >= (90 << 20)    # v5e/v6e-class (128 MiB phys)
    if tile_m is None:
        tile_m = 768 if big_vmem else 512        # v6e wants tm>=640; v7x ~512
    if tile_h is None:
        tile_h = 512 if big_vmem else 256

    # --- M tile: sublane/MXU aligned, never bigger than (padded) M ---
    tm_align = 256 if tile_m >= 256 else (128 if tile_m >= 128 else sub)
    tm = min(_round_up(tile_m, tm_align), _round_up(M, sub))

    # --- H slab: largest 128-multiple divisor of H that is <= tile_h ---
    th = _choose_th(H, tile_h)

    # --- Safety: shrink th (then tm) if the working set overflows the budget ---
    budget = int(0.85 * vmem_limit_bytes)
    while (_vmem_estimate_bytes(tm, th, C, in_bytes, in_bytes) > budget
           and th > 128 and H % 128 == 0):
        th = _choose_th(H, th // 2)
    while _vmem_estimate_bytes(tm, th, C, in_bytes, in_bytes) > budget:
        new_tm = max(sub, _round_up(tm // 2, sub))
        if new_tm == tm:
            break
        tm = new_tm

    M_pad = _round_up(M, tm)
    x2d = x.reshape(M, C)
    if M_pad != M:
        # TODO(synk): replace the pad copy with a ragged final M block / masked
        # store for very large non-aligned M (pad is only hit when M % tm != 0).
        x2d = jnp.pad(x2d, ((0, M_pad - M), (0, 0)))

    b1_2d = b1.reshape(1, H)
    b2_2d = b2.reshape(1, H)
    bp_2d = bp.reshape(1, C)

    grid = (M_pad // tm, H // th)

    kernel = functools.partial(swiglu_kernel, mxu_dtype=mxu_dtype)

    out2d = pl.pallas_call(
        kernel,
        out_shape=jax.ShapeDtypeStruct((M_pad, C), x.dtype),
        grid_spec=pltpu.PrefetchScalarGridSpec(
            num_scalar_prefetch=0,
            grid=grid,
            in_specs=[
                pl.BlockSpec((tm, C), lambda m, h: (m, 0)),   # x rows tile
                pl.BlockSpec((C, th), lambda m, h: (0, h)),   # W1 slab
                pl.BlockSpec((1, th), lambda m, h: (0, h)),   # b1 slab
                pl.BlockSpec((C, th), lambda m, h: (0, h)),   # W2 slab
                pl.BlockSpec((1, th), lambda m, h: (0, h)),   # b2 slab
                pl.BlockSpec((th, C), lambda m, h: (h, 0)),   # Wp slab
                pl.BlockSpec((1, C), lambda m, h: (0, 0)),    # bp (invariant)
            ],
            out_specs=pl.BlockSpec((tm, C), lambda m, h: (m, 0)),
            scratch_shapes=[pltpu.VMEM((tm, C), jnp.float32)],  # c_proj accum
        ),
        # M axis parallel (megacore / v7x dual-TC sharding), H axis is the
        # c_proj reduction -> arbitrary and last.
        compiler_params=pltpu.CompilerParams(
            dimension_semantics=("parallel", "arbitrary"),
            vmem_limit_bytes=int(vmem_limit_bytes),
        ),
    )(x2d, w1, b1_2d, w2, b2_2d, wp, bp_2d)

    if M_pad != M:
        out2d = out2d[:M]
    return out2d.reshape(B, T, C)


def reference_forward(x, w1, b1, w2, b2, wp, bp):
    xf = x.astype(jnp.float32)
    h1 = xf @ w1.astype(jnp.float32) + b1.astype(jnp.float32)
    h2 = xf @ w2.astype(jnp.float32) + b2.astype(jnp.float32)
    g = h1 * (h2 * jax.nn.sigmoid(h2))
    return g @ wp.astype(jnp.float32) + bp.astype(jnp.float32)


if __name__ == "__main__":
    # Small, lane-dense shapes consistent with the module: n_embd=128 -> hidden=512.
    # M = B*T = 15 is deliberately NOT a multiple of the tile -> exercises padding.
    B, T, C = 3, 5, 128
    H = C * 4

    key = jax.random.PRNGKey(0)
    kx, k1, k2, k3, k4, k5, k6 = jax.random.split(key, 7)

    x = jax.random.normal(kx, (B, T, C), dtype=jnp.float32)
    # Deterministic "Linear"-like params (stored as (in, out))
    w1 = jax.random.normal(k1, (C, H), dtype=jnp.float32) * (1.0 / jnp.sqrt(C))
    b1 = jax.random.normal(k2, (H,), dtype=jnp.float32) * 0.01
    w2 = jax.random.normal(k3, (C, H), dtype=jnp.float32) * (1.0 / jnp.sqrt(C))
    b2 = jax.random.normal(k4, (H,), dtype=jnp.float32) * 0.01
    wp = jax.random.normal(k5, (H, C), dtype=jnp.float32) * (1.0 / jnp.sqrt(H))
    bp = jax.random.normal(k6, (C,), dtype=jnp.float32) * 0.01

    ref = reference_forward(x, w1, b1, w2, b2, wp, bp).reshape(B, T, C)

    # --- f32 path: tile_h < H so the H-slab accumulation path is exercised ---
    out = expert_moe_forward(x, w1, b1, w2, b2, wp, bp, tile_m=256, tile_h=256)
    out = jax.block_until_ready(out)
    assert out.shape == (B, T, C)
    assert jnp.allclose(out, ref, atol=1e-3, rtol=1e-3), "f32 mismatch vs reference"

    # --- bf16 fast path; tile_h=384 does NOT divide H=512, exercising the
    #     largest-128-multiple-divisor fallback (picks th=256, never th=H) ---
    bf = jnp.bfloat16
    out_bf16 = expert_moe_forward(
        x.astype(bf), w1.astype(bf), b1.astype(bf), w2.astype(bf),
        b2.astype(bf), wp.astype(bf), bp.astype(bf), tile_m=256, tile_h=384)
    out_bf16 = jax.block_until_ready(out_bf16)
    assert jnp.allclose(out_bf16.astype(jnp.float32), ref, atol=1e-1, rtol=1e-1), \
        "bf16 mismatch vs reference"

    print("KERNEL_OK")
</pallas_src>

<mosaic_0001>
module attributes {stable_mosaic.version = 11 : i64} {
  func.func @swiglu_kernel(%arg0: i32, %arg1: i32, %arg2: memref<16x128xf32, #tpu.memory_space<vmem>>, %arg3: memref<128x256xf32, #tpu.memory_space<vmem>>, %arg4: memref<1x256xf32, #tpu.memory_space<vmem>>, %arg5: memref<128x256xf32, #tpu.memory_space<vmem>>, %arg6: memref<1x256xf32, #tpu.memory_space<vmem>>, %arg7: memref<256x128xf32, #tpu.memory_space<vmem>>, %arg8: memref<1x128xf32, #tpu.memory_space<vmem>>, %arg9: memref<16x128xf32, #tpu.memory_space<vmem>>, %arg10: memref<16x128xf32, #tpu.memory_space<vmem>>) attributes {dimension_semantics = [#tpu.dimension_semantics<parallel>, #tpu.dimension_semantics<arbitrary>], iteration_bounds = array<i64: 1, 2>, scalar_prefetch = 0 : i64, scratch_operands = 1 : i64, tpu.core_type = #tpu.core_type<tc>, window_params = [{transform_indices = @transform_0, window_bounds = array<i64: 16, 128>}, {transform_indices = @transform_1, window_bounds = array<i64: 128, 256>}, {transform_indices = @transform_2, window_bounds = array<i64: 1, 256>}, {transform_indices = @transform_3, window_bounds = array<i64: 128, 256>}, {transform_indices = @transform_4, window_bounds = array<i64: 1, 256>}, {transform_indices = @transform_5, window_bounds = array<i64: 256, 128>}, {pipeline_mode = #tpu.pipeline_mode<synchronous>, transform_indices = @transform_6, window_bounds = array<i64: 1, 128>}, {transform_indices = @transform_7, window_bounds = array<i64: 16, 128>}]} {
    %c0_i32 = arith.constant 0 : i32
    %0 = arith.cmpi eq, %arg1, %c0_i32 : i32
    %1 = arith.extui %0 : i1 to i32
    %c0_i32_0 = arith.constant 0 : i32
    %2 = arith.cmpi ne, %1, %c0_i32_0 : i32
    scf.if %2 {
      %c0_20 = arith.constant 0 : index
      %c0_21 = arith.constant 0 : index
      %29 = vector.load %arg8[%c0_20, %c0_21] : memref<1x128xf32, #tpu.memory_space<vmem>>, vector<1x128xf32>
      %30 = vector.shape_cast %29 : vector<1x128xf32> to vector<1x128xf32>
      %31 = vector.broadcast %30 : vector<1x128xf32> to vector<16x128xf32>
      %c0_22 = arith.constant 0 : index
      %c0_23 = arith.constant 0 : index
      %32 = vector.load %arg10[%c0_22, %c0_23] : memref<16x128xf32, #tpu.memory_space<vmem>>, vector<16x128xf32>
      tpu.vector_store %arg10[%c0_22, %c0_23], %31 {strides = array<i32>} : memref<16x128xf32, #tpu.memory_space<vmem>>, vector<16x128xf32>,
    } else {
    }
    %c0 = arith.constant 0 : index
    %c0_1 = arith.constant 0 : index
    %3 = vector.load %arg2[%c0, %c0_1] : memref<16x128xf32, #tpu.memory_space<vmem>>, vector<16x128xf32>
    %c0_2 = arith.constant 0 : index
    %c0_3 = arith.constant 0 : index
    %4 = vector.load %arg3[%c0_2, %c0_3] : memref<128x256xf32, #tpu.memory_space<vmem>>, vector<128x256xf32>
    %c0_4 = arith.constant 0 : index
    %c0_5 = arith.constant 0 : index
    %5 = vector.load %arg5[%c0_4, %c0_5] : memref<128x256xf32, #tpu.memory_space<vmem>>, vector<128x256xf32>
    %c0_6 = arith.constant 0 : index
    %c0_7 = arith.constant 0 : index
    %6 = vector.load %arg7[%c0_6, %c0_7] : memref<256x128xf32, #tpu.memory_space<vmem>>, vector<256x128xf32>
    %cst = arith.constant dense<0.000000e+00> : vector<16x256xf32>
    %7 = tpu.matmul %3, %4, %cst {dimension_numbers = #tpu.dot_dimension_numbers<[1], [0], [0], [1], [0, 0, 1, 1], [], []>} : vector<16x128xf32>, vector<128x256xf32>, vector<16x256xf32> -> vector<16x256xf32>
    %c0_8 = arith.constant 0 : index
    %c0_9 = arith.constant 0 : index
    %8 = vector.load %arg4[%c0_8, %c0_9] : memref<1x256xf32, #tpu.memory_space<vmem>>, vector<1x256xf32>
    %9 = vector.broadcast %8 : vector<1x256xf32> to vector<16x256xf32>
    %10 = arith.addf %7, %9 : vector<16x256xf32>
    %cst_10 = arith.constant dense<0.000000e+00> : vector<16x256xf32>
    %11 = tpu.matmul %3, %5, %cst_10 {dimension_numbers = #tpu.dot_dimension_numbers<[1], [0], [0], [1], [0, 0, 1, 1], [], []>} : vector<16x128xf32>, vector<128x256xf32>, vector<16x256xf32> -> vector<16x256xf32>
    %c0_11 = arith.constant 0 : index
    %c0_12 = arith.constant 0 : index
    %12 = vector.load %arg6[%c0_11, %c0_12] : memref<1x256xf32, #tpu.memory_space<vmem>>, vector<1x256xf32>
    %13 = vector.broadcast %12 : vector<1x256xf32> to vector<16x256xf32>
    %14 = arith.addf %11, %13 : vector<16x256xf32>
    %15 = arith.negf %14 : vector<16x256xf32>
    %16 = math.exp %15 : vector<16x256xf32>
    %cst_13 = arith.constant 1.000000e+00 : f32
    %17 = vector.broadcast %cst_13 : f32 to vector<16x256xf32>
    %18 = arith.addf %17, %16 : vector<16x256xf32>
    %19 = arith.divf %17, %18 : vector<16x256xf32>
    %20 = arith.mulf %14, %19 : vector<16x256xf32>
    %21 = arith.mulf %10, %20 : vector<16x256xf32>
    %c0_14 = arith.constant 0 : index
    %c0_15 = arith.constant 0 : index
    %22 = vector.load %arg10[%c0_14, %c0_15] : memref<16x128xf32, #tpu.memory_space<vmem>>, vector<16x128xf32>
    %cst_16 = arith.constant dense<0.000000e+00> : vector<16x128xf32>
    %23 = tpu.matmul %21, %6, %cst_16 {dimension_numbers = #tpu.dot_dimension_numbers<[1], [0], [0], [1], [0, 0, 1, 1], [], []>} : vector<16x256xf32>, vector<256x128xf32>, vector<16x128xf32> -> vector<16x128xf32>
    %24 = arith.addf %22, %23 : vector<16x128xf32>
    %c0_17 = arith.constant 0 : index
    %c0_18 = arith.constant 0 : index
    %25 = vector.load %arg10[%c0_17, %c0_18] : memref<16x128xf32, #tpu.memory_space<vmem>>, vector<16x128xf32>
    tpu.vector_store %arg10[%c0_17, %c0_18], %24 {strides = array<i32>} : memref<16x128xf32, #tpu.memory_space<vmem>>, vector<16x128xf32>,
    %c1_i32 = arith.constant 1 : i32
    %26 = arith.cmpi eq, %arg1, %c1_i32 : i32
    %27 = arith.extui %26 : i1 to i32
    %c0_i32_19 = arith.constant 0 : i32
    %28 = arith.cmpi ne, %27, %c0_i32_19 : i32
    scf.if %28 {
      %c0_20 = arith.constant 0 : index
      %c0_21 = arith.constant 0 : index
      %29 = vector.load %arg10[%c0_20, %c0_21] : memref<16x128xf32, #tpu.memory_space<vmem>>, vector<16x128xf32>
      %c0_22 = arith.constant 0 : index
      %c0_23 = arith.constant 0 : index
      %30 = vector.load %arg9[%c0_22, %c0_23] : memref<16x128xf32, #tpu.memory_space<vmem>>, vector<16x128xf32>
      tpu.vector_store %arg9[%c0_22, %c0_23], %29 {strides = array<i32>} : memref<16x128xf32, #tpu.memory_space<vmem>>, vector<16x128xf32>,
    } else {
    }
    return
  }
  func.func @transform_0(%arg0: i32, %arg1: i32) -> (i32, i32) {
    %c0_i32 = arith.constant 0 : i32
    %c0_i32_0 = arith.constant 0 : i32
    return %arg0, %c0_i32 : i32, i32
  }
  func.func @transform_1(%arg0: i32, %arg1: i32) -> (i32, i32) {
    %c0_i32 = arith.constant 0 : i32
    %c0_i32_0 = arith.constant 0 : i32
    return %c0_i32, %arg1 : i32, i32
  }
  func.func @transform_2(%arg0: i32, %arg1: i32) -> (i32, i32) {
    %c0_i32 = arith.constant 0 : i32
    %c0_i32_0 = arith.constant 0 : i32
    return %c0_i32, %arg1 : i32, i32
  }
  func.func @transform_3(%arg0: i32, %arg1: i32) -> (i32, i32) {
    %c0_i32 = arith.constant 0 : i32
    %c0_i32_0 = arith.constant 0 : i32
    return %c0_i32, %arg1 : i32, i32
  }
  func.func @transform_4(%arg0: i32, %arg1: i32) -> (i32, i32) {
    %c0_i32 = arith.constant 0 : i32
    %c0_i32_0 = arith.constant 0 : i32
    return %c0_i32, %arg1 : i32, i32
  }
  func.func @transform_5(%arg0: i32, %arg1: i32) -> (i32, i32) {
    %c0_i32 = arith.constant 0 : i32
    %c0_i32_0 = arith.constant 0 : i32
    return %arg1, %c0_i32 : i32, i32
  }
  func.func @transform_6(%arg0: i32, %arg1: i32) -> (i32, i32) {
    %c0_i32 = arith.constant 0 : i32
    %c0_i32_0 = arith.constant 0 : i32
    %c0_i32_1 = arith.constant 0 : i32
    return %c0_i32, %c0_i32_0 : i32, i32
  }
  func.func @transform_7(%arg0: i32, %arg1: i32) -> (i32, i32) {
    %c0_i32 = arith.constant 0 : i32
    %c0_i32_0 = arith.constant 0 : i32
    return %arg0, %c0_i32 : i32, i32
  }
}

</mosaic_0001>

<llo_original>
// kernel: tpu_custom_call.1
$region0: #{tpu_custom_call.1}
  #allocation0 [shape = 'u32[]', space=smem, size = 0x4, offset = 0x4, fixed_abs, tag = 'smem constant byte address 0x4 - core index']
  #allocation1 [shape = 'u32[144,128]{1,0:T(1,128)}', space=vmem, size = 0x12000, scoped, tag = 'internal scratch']
  #allocation2 [shape = 'f32[16,128]{1,0:T(8,128)}', space=vmem, size = 0x2000, scoped, tag = 'scratch operand']
  %s0 = inlined_call_operand.hbm [shape: f32[16,128], index: 0, kind: input, shape index: {}]
  %s1 = inlined_call_operand.hbm [shape: f32[128,512], index: 1, kind: input, shape index: {}]
  %s2 = inlined_call_operand.vmem [shape: f32[1,512], index: 2, kind: input, shape index: {}]
  %s3 = inlined_call_operand.hbm [shape: f32[128,512], index: 3, kind: input, shape index: {}]
  %s4 = inlined_call_operand.vmem [shape: f32[1,512], index: 4, kind: input, shape index: {}]
  %s5 = inlined_call_operand.hbm [shape: f32[512,128], index: 5, kind: input, shape index: {}]
  %s6 = inlined_call_operand.vmem [shape: f32[1,128], index: 6, kind: input, shape index: {}]
  %s7 = inlined_call_operand.hbm [shape: f32[16,128], index: 7, kind: output, shape index: {}]
  %s8 = sld [smem:[#allocation0]]
  $region85: #{tpu_custom_call.1} parent=0
    _
  %s10 = ssub.s32 1, %s8
  %s11 = scalar_select 0, %s10, %s8
  $region1: #{tpu_custom_call.1} parent=0
    #allocation3 [shape = 'u8[8192]{0}', space=vmem, size = 0x2000, scoped, tag = 'input window, operand 0, single buffered']
    #allocation4 [shape = 's32[2]{0}', space=sflag, size = 0x8, scoped, tag = 'scoped memory for tpu_custom_call.1']
    #allocation5 [shape = 's32[2]{0}', space=sflag, size = 0x8, scoped, tag = 'scoped memory for tpu_custom_call.1']
    #allocation6 [shape = 'u8[262144]{0}', space=vmem, size = 0x40000, scoped, tag = 'input window, operand 1']
    #allocation7 [shape = 's32[2]{0}', space=sflag, size = 0x8, scoped, tag = 'scoped memory for tpu_custom_call.1']
    #allocation8 [shape = 'u8[262144]{0}', space=vmem, size = 0x40000, scoped, tag = 'input window, operand 3']
    #allocation9 [shape = 'u8[262144]{0}', space=vmem, size = 0x40000, scoped, tag = 'input window, operand 5']
    #allocation10 [shape = 's32[2]{0}', space=sflag, size = 0x8, scoped, tag = 'scoped memory for tpu_custom_call.1']
    #allocation11 [shape = 'u8[8192]{0}', space=vmem, size = 0x2000, scoped, tag = 'output window, operand 0, single buffered']
    %12 = vsyncpa [#allocation4], 0
    %13 = vsyncpa [#allocation7], 0
    %s14 = scalar_lea.sflag [#allocation7], 1
    %15 = vsyncpa %s14, 0
    %16 = vsyncpa [#allocation10], 0
    %s17 = scalar_lea.sflag [#allocation10], 1
    %18 = vsyncpa %s17, 0
    %19 = vsyncpa [#allocation5], 0
    loop: start=0, step=1, limit=4
    $region2: #{tpu_custom_call.1} parent=1 // loop_pre_header
      _
    $region3: #{tpu_custom_call.1} parent=1 // loop_header
      %s21 = sphi 0, %s25
      %p22 = scmp.ge.s32.totalorder %s21, 4
      %s28 = sphi 0, %s40
      %s29 = sphi 0, %s36
      %s30 = sphi 0, %s28
      %s31 = sphi 0, %s29
      %s32 = sphi 0, %s30
      %s33 = sphi 0, %s31
      %s43 = sphi 0, %s45
      %s46 = sphi 0, %s43
      %s47 = sphi 0, %s46
      %s63 = sphi 0, %s47
      %s69 = sphi 0, %s71
      %s72 = sphi 0, %s69
      %s73 = sphi 0, %s72
      %s89 = sphi 0, %s73
      %s95 = sphi 0, %s97
      %s98 = sphi 0, %s95
      %s99 = sphi 0, %s98
      %s115 = sphi 0, %s99
      %s121 = sphi 0, %s123
      %s124 = sphi 0, %s121
      %s125 = sphi 0, %s124
      %s141 = sphi 0, %s125
      %s147 = sphi 0, %s149
      %s150 = sphi 0, %s147
      %s151 = sphi 0, %s150
      %s167 = sphi 0, %s151
      %s173 = sphi 0, %s175
      %s176 = sphi 0, %s173
      %s177 = sphi 0, %s176
      %s193 = sphi 0, %s177
      %s197 = sphi 0, %s197
      %s199 = sphi 0, %s197
      %s200 = sphi 0, %s199
      %s214 = sphi 0, %s200
      %s220 = sphi 0, %s222
      %s223 = sphi 0, %s220
      %s224 = sphi 0, %s223
      %s240 = sphi 0, %s224
    $region4: #{tpu_custom_call.1} parent=1 // loop_header_branch
      %24 = sbr.rel (%p22) target = $region8
    $region5: #{tpu_custom_call.1} parent=1 // loop_body
      %s26 = ssub.s32 %s21, 1
      %s27 = ssub.s32 %s21, 2
      %s34 = sadd.s32 1, %s29
      %p35 = scmp.ge.s32.totalorder %s34, 2
      %s36 = scalar_select %p35, 0, %s34
      %s37 = sadd.s32 1, %s28
      %s38 = scalar_select %p35, %s37, %s28
      %p39 = scmp.ge.s32.totalorder %s38, 1
      %s40 = scalar_select %p39, 0, %s38
      %s41 = ssub.s32 %s28, %s40
      %p42 = scmp.eq.s32.totalorder %s41, 0
      %s44 = sadd.s32 %s43, 1
      %s45 = scalar_select %p42, %s43, %s44
      %p48 = pneg %p42
      %p49 = scmp.eq.s32.totalorder %s21, 1
      %p50 = por %p48, %p49
      %p51 = scmp.ne.s32.totalorder %s43, %s46
      %p52 = scmp.eq.s32.totalorder %s21, 0
      %p53 = por %p51, %p52
      %p54 = scmp.ne.s32.totalorder %s43, %s46
      %p55 = scmp.eq.s32.totalorder %s26, 1
      %p56 = por %p54, %p55
      %p57 = scmp.ne.s32.totalorder %s46, %s47
      %p58 = scmp.eq.s32.totalorder %s26, 0
      %p59 = por %p57, %p58
      %p60 = scmp.ne.s32.totalorder %s46, %s47
      %p61 = scmp.eq.s32.totalorder %s27, 1
      %p62 = por %p60, %p61
      %p64 = scmp.ne.s32.totalorder %s47, %s63
      %p65 = scmp.eq.s32.totalorder %s27, 0
      %p66 = por %p64, %p65
      %s67 = ssub.s32 %s29, %s36
      %p68 = scmp.eq.s32.totalorder %s67, 0
      %s70 = sadd.s32 %s69, 1
      %s71 = scalar_select %p68, %s69, %s70
      %p74 = pneg %p68
      %p75 = scmp.eq.s32.totalorder %s21, 1
      %p76 = por %p74, %p75
      %p77 = scmp.ne.s32.totalorder %s69, %s72
      %p78 = scmp.eq.s32.totalorder %s21, 0
      %p79 = por %p77, %p78
      %p80 = scmp.ne.s32.totalorder %s69, %s72
      %p81 = scmp.eq.s32.totalorder %s26, 1
      %p82 = por %p80, %p81
      %p83 = scmp.ne.s32.totalorder %s72, %s73
      %p84 = scmp.eq.s32.totalorder %s26, 0
      %p85 = por %p83, %p84
      %p86 = scmp.ne.s32.totalorder %s72, %s73
      %p87 = scmp.eq.s32.totalorder %s27, 1
      %p88 = por %p86, %p87
      %p90 = scmp.ne.s32.totalorder %s73, %s89
      %p91 = scmp.eq.s32.totalorder %s27, 0
      %p92 = por %p90, %p91
      %s93 = ssub.s32 %s29, %s36
      %p94 = scmp.eq.s32.totalorder %s93, 0
      %s96 = sadd.s32 %s95, 1
      %s97 = scalar_select %p94, %s95, %s96
      %p100 = pneg %p94
      %p101 = scmp.eq.s32.totalorder %s21, 1
      %p102 = por %p100, %p101
      %p103 = scmp.ne.s32.totalorder %s95, %s98
      %p104 = scmp.eq.s32.totalorder %s21, 0
      %p105 = por %p103, %p104
      %p106 = scmp.ne.s32.totalorder %s95, %s98
      %p107 = scmp.eq.s32.totalorder %s26, 1
      %p108 = por %p106, %p107
      %p109 = scmp.ne.s32.totalorder %s98, %s99
      %p110 = scmp.eq.s32.totalorder %s26, 0
      %p111 = por %p109, %p110
      %p112 = scmp.ne.s32.totalorder %s98, %s99
      %p113 = scmp.eq.s32.totalorder %s27, 1
      %p114 = por %p112, %p113
      %p116 = scmp.ne.s32.totalorder %s99, %s115
      %p117 = scmp.eq.s32.totalorder %s27, 0
      %p118 = por %p116, %p117
      %s119 = ssub.s32 %s29, %s36
      %p120 = scmp.eq.s32.totalorder %s119, 0
      %s122 = sadd.s32 %s121, 1
      %s123 = scalar_select %p120, %s121, %s122
      %p126 = pneg %p120
      %p127 = scmp.eq.s32.totalorder %s21, 1
      %p128 = por %p126, %p127
      %p129 = scmp.ne.s32.totalorder %s121, %s124
      %p130 = scmp.eq.s32.totalorder %s21, 0
      %p131 = por %p129, %p130
      %p132 = scmp.ne.s32.totalorder %s121, %s124
      %p133 = scmp.eq.s32.totalorder %s26, 1
      %p134 = por %p132, %p133
      %p135 = scmp.ne.s32.totalorder %s124, %s125
      %p136 = scmp.eq.s32.totalorder %s26, 0
      %p137 = por %p135, %p136
      %p138 = scmp.ne.s32.totalorder %s124, %s125
      %p139 = scmp.eq.s32.totalorder %s27, 1
      %p140 = por %p138, %p139
      %p142 = scmp.ne.s32.totalorder %s125, %s141
      %p143 = scmp.eq.s32.totalorder %s27, 0
      %p144 = por %p142, %p143
      %s145 = ssub.s32 %s29, %s36
      %p146 = scmp.eq.s32.totalorder %s145, 0
      %s148 = sadd.s32 %s147, 1
      %s149 = scalar_select %p146, %s147, %s148
      %p152 = pneg %p146
      %p153 = scmp.eq.s32.totalorder %s21, 1
      %p154 = por %p152, %p153
      %p155 = scmp.ne.s32.totalorder %s147, %s150
      %p156 = scmp.eq.s32.totalorder %s21, 0
      %p157 = por %p155, %p156
      %p158 = scmp.ne.s32.totalorder %s147, %s150
      %p159 = scmp.eq.s32.totalorder %s26, 1
      %p160 = por %p158, %p159
      %p161 = scmp.ne.s32.totalorder %s150, %s151
      %p162 = scmp.eq.s32.totalorder %s26, 0
      %p163 = por %p161, %p162
      %p164 = scmp.ne.s32.totalorder %s150, %s151
      %p165 = scmp.eq.s32.totalorder %s27, 1
      %p166 = por %p164, %p165
      %p168 = scmp.ne.s32.totalorder %s151, %s167
      %p169 = scmp.eq.s32.totalorder %s27, 0
      %p170 = por %p168, %p169
      %s171 = ssub.s32 %s29, %s36
      %p172 = scmp.eq.s32.totalorder %s171, 0
      %s174 = sadd.s32 %s173, 1
      %s175 = scalar_select %p172, %s173, %s174
      %p178 = pneg %p172
      %p179 = scmp.eq.s32.totalorder %s21, 1
      %p180 = por %p178, %p179
      %p181 = scmp.ne.s32.totalorder %s173, %s176
      %p182 = scmp.eq.s32.totalorder %s21, 0
      %p183 = por %p181, %p182
      %p184 = scmp.ne.s32.totalorder %s173, %s176
      %p185 = scmp.eq.s32.totalorder %s26, 1
      %p186 = por %p184, %p185
      %p187 = scmp.ne.s32.totalorder %s176, %s177
      %p188 = scmp.eq.s32.totalorder %s26, 0
      %p189 = por %p187, %p188
      %p190 = scmp.ne.s32.totalorder %s176, %s177
      %p191 = scmp.eq.s32.totalorder %s27, 1
      %p192 = por %p190, %p191
      %p194 = scmp.ne.s32.totalorder %s177, %s193
      %p195 = scmp.eq.s32.totalorder %s27, 0
      %p196 = por %p194, %p195
      %s198 = sadd.s32 %s197, 1
      %p201 = scmp.eq.s32.totalorder %s21, 1
      %p202 = scmp.ne.s32.totalorder %s197, %s199
      %p203 = scmp.eq.s32.totalorder %s21, 0
      %p204 = por %p202, %p203
      %p205 = scmp.ne.s32.totalorder %s197, %s199
      %p206 = scmp.eq.s32.totalorder %s26, 1
      %p207 = por %p205, %p206
      %p208 = scmp.ne.s32.totalorder %s199, %s200
      %p209 = scmp.eq.s32.totalorder %s26, 0
      %p210 = por %p208, %p209
      %p211 = scmp.ne.s32.totalorder %s199, %s200
      %p212 = scmp.eq.s32.totalorder %s27, 1
      %p213 = por %p211, %p212
      %p215 = scmp.ne.s32.totalorder %s200, %s214
      %p216 = scmp.eq.s32.totalorder %s27, 0
      %p217 = por %p215, %p216
      %s218 = ssub.s32 %s28, %s40
      %p219 = scmp.eq.s32.totalorder %s218, 0
      %s221 = sadd.s32 %s220, 1
      %s222 = scalar_select %p219, %s220, %s221
      %p225 = pneg %p219
      %p226 = scmp.eq.s32.totalorder %s21, 1
      %p227 = por %p225, %p226
      %p228 = scmp.ne.s32.totalorder %s220, %s223
      %p229 = scmp.eq.s32.totalorder %s21, 0
      %p230 = por %p228, %p229
      %p231 = scmp.ne.s32.totalorder %s220, %s223
      %p232 = scmp.eq.s32.totalorder %s26, 1
      %p233 = por %p231, %p232
      %p234 = scmp.ne.s32.totalorder %s223, %s224
      %p235 = scmp.eq.s32.totalorder %s26, 0
      %p236 = por %p234, %p235
      %p237 = scmp.ne.s32.totalorder %s223, %s224
      %p238 = scmp.eq.s32.totalorder %s27, 1
      %p239 = por %p237, %p238
      %p241 = scmp.ne.s32.totalorder %s224, %s240
      %p242 = scmp.eq.s32.totalorder %s27, 0
      %p243 = por %p241, %p242
      %p244 = scmp.le.s32.totalorder 1, %s21
      %p245 = scmp.lt.s32.totalorder %s21, 3
      %p246 = pnand %p244, %p245
      %p247 = pneg %p246
      // Predicated region
      $region9: #{tpu_custom_call.1} parent=5 // pred_check
        _
      $region10: #{tpu_custom_call.1} parent=5 // pred_check_branch
        %249 = sbr.rel (%p246) target = $region12
      $region11: #{tpu_custom_call.1} parent=5 // pred_region
        %s250 = ssub.s32 %s21, 1
        // Predicated region
        $region13: #{tpu_custom_call.1} parent=11 // pred_check
          %p251 = pneg %p59
        $region14: #{tpu_custom_call.1} parent=11 // pred_check_branch
          %253 = sbr.rel (%p251) target = $region16
        $region15: #{tpu_custom_call.1} parent=11 // pred_region
          %s254 = smul.u32 2, %s30
          %s256 = ssub.s32 256, 256
          %257 = vsyncadd [#allocation4], %s256
          %s258 = smul.addr %s254, 128
          %s259 = scalar_lea.hbm %s0, %s258
          %s260 = sshll.u32 [#allocation3], 4
          %s261 = int_to_ptr.vmem [resolvable:$true] %s260
          %266 = dma.hbm_to_vmem [thread:$0]  %s259, 256, %s261, [#allocation4], 128, 128, 8
        $region16: #{tpu_custom_call.1} parent=11 // pred_fallthru
          _
        // Predicated region
        $region17: #{tpu_custom_call.1} parent=11 // pred_check
          %p267 = pneg %p210
        $region18: #{tpu_custom_call.1} parent=11 // pred_check_branch
          %269 = sbr.rel (%p267) target = $region20
        $region19: #{tpu_custom_call.1} parent=11 // pred_region
          _
        $region20: #{tpu_custom_call.1} parent=11 // pred_fallthru
          _
      $region12: #{tpu_custom_call.1} parent=5 // pred_fallthru
        _
      %p270 = scmp.lt.s32.totalorder %s21, 2
      // Predicated region
      $region21: #{tpu_custom_call.1} parent=5 // pred_check
        %p271 = pneg %p270
      $region22: #{tpu_custom_call.1} parent=5 // pred_check_branch
        %273 = sbr.rel (%p271) target = $region24
      $region23: #{tpu_custom_call.1} parent=5 // pred_region
        // Predicated region
        $region25: #{tpu_custom_call.1} parent=23 // pred_check
          %p274 = pneg %p79
        $region26: #{tpu_custom_call.1} parent=23 // pred_check_branch
          %276 = sbr.rel (%p274) target = $region28
        $region27: #{tpu_custom_call.1} parent=23 // pred_region
          %s277 = sand.u32 %s21, 1
          %s278 = scalar_lea.sflag [#allocation7], %s277
          %s279 = sand.u32 %s69, 1
          %s280 = smul.addr %s279, 256
          %s281 = scalar_lea.vmem [#allocation6], %s280
          %s282 = smul.u32 2, %s29
          %s284 = ssub.s32 4096, 4096
          %285 = vsyncadd %s278, %s284
          %s286 = smul.addr %s282, 128
          %s287 = scalar_lea.hbm %s1, %s286
          %s288 = sshll.u32 %s281, 4
          %s289 = int_to_ptr.vmem [resolvable:$true] %s288
          %294 = dma.hbm_to_vmem [thread:$0]  %s287, 4096, %s289, %s278, 512, 256, 16
        $region28: #{tpu_custom_call.1} parent=23 // pred_fallthru
          _
        // Predicated region
        $region29: #{tpu_custom_call.1} parent=23 // pred_check
          %p295 = pneg %p105
        $region30: #{tpu_custom_call.1} parent=23 // pred_check_branch
          %297 = sbr.rel (%p295) target = $region32
        $region31: #{tpu_custom_call.1} parent=23 // pred_region
          %s298 = smul.u32 2, %s29
          %p299 = scmp.lt.s32.totalorder %s298, 3
          %s300 = scalar_select %p299, %s298, 3
          %s301 = scalar_lea.vmem %s2, %s300
          %s302 = smul.u32 2, %s29
        $region32: #{tpu_custom_call.1} parent=23 // pred_fallthru
          _
        // Predicated region
        $region33: #{tpu_custom_call.1} parent=23 // pred_check
          %p303 = pneg %p131
        $region34: #{tpu_custom_call.1} parent=23 // pred_check_branch
          %305 = sbr.rel (%p303) target = $region36
        $region35: #{tpu_custom_call.1} parent=23 // pred_region
          %s306 = sand.u32 %s21, 1
          %s307 = scalar_lea.sflag [#allocation7], %s306
          %s308 = sand.u32 %s121, 1
          %s309 = smul.addr %s308, 256
          %s310 = scalar_lea.vmem [#allocation8], %s309
          %s311 = smul.u32 2, %s29
          %s313 = ssub.s32 4096, 4096
          %314 = vsyncadd %s307, %s313
          %s315 = smul.addr %s311, 128
          %s316 = scalar_lea.hbm %s3, %s315
          %s317 = sshll.u32 %s310, 4
          %s318 = int_to_ptr.vmem [resolvable:$true] %s317
          %323 = dma.hbm_to_vmem [thread:$0]  %s316, 4096, %s318, %s307, 512, 256, 16
        $region36: #{tpu_custom_call.1} parent=23 // pred_fallthru
          _
        // Predicated region
        $region37: #{tpu_custom_call.1} parent=23 // pred_check
          %p324 = pneg %p157
        $region38: #{tpu_custom_call.1} parent=23 // pred_check_branch
          %326 = sbr.rel (%p324) target = $region40
        $region39: #{tpu_custom_call.1} parent=23 // pred_region
          %s327 = smul.u32 2, %s29
          %p328 = scmp.lt.s32.totalorder %s327, 3
          %s329 = scalar_select %p328, %s327, 3
          %s330 = scalar_lea.vmem %s4, %s329
          %s331 = smul.u32 2, %s29
        $region40: #{tpu_custom_call.1} parent=23 // pred_fallthru
          _
        // Predicated region
        $region41: #{tpu_custom_call.1} parent=23 // pred_check
          %p332 = pneg %p183
        $region42: #{tpu_custom_call.1} parent=23 // pred_check_branch
          %334 = sbr.rel (%p332) target = $region44
        $region43: #{tpu_custom_call.1} parent=23 // pred_region
          %s335 = sand.u32 %s173, 1
          %s336 = scalar_lea.sflag [#allocation10], %s335
          %s337 = sand.u32 %s173, 1
          %s338 = smul.addr %s337, 256
          %s339 = scalar_lea.vmem [#allocation9], %s338
          %s340 = smul.u32 32, %s29
          %s342 = ssub.s32 4096, 4096
          %343 = vsyncadd %s336, %s342
          %s344 = smul.addr %s340, 128
          %s345 = scalar_lea.hbm %s5, %s344
          %s346 = sshll.u32 %s339, 4
          %s347 = int_to_ptr.vmem [resolvable:$true] %s346
          %352 = dma.hbm_to_vmem [thread:$0]  %s345, 4096, %s347, %s336, 128, 128, 8
        $region44: #{tpu_custom_call.1} parent=23 // pred_fallthru
          _
      $region24: #{tpu_custom_call.1} parent=5 // pred_fallthru
        _
      %p353 = scmp.le.s32.totalorder 1, %s21
      %p354 = scmp.lt.s32.totalorder %s21, 3
      %p355 = pnand %p353, %p354
      %p356 = pneg %p355
      // Predicated region
      $region45: #{tpu_custom_call.1} parent=5 // pred_check
        _
      $region46: #{tpu_custom_call.1} parent=5 // pred_check_branch
        %358 = sbr.rel (%p355) target = $region48
      $region47: #{tpu_custom_call.1} parent=5 // pred_region
        %s359 = ssub.s32 %s21, 1
        // Predicated region
        $region49: #{tpu_custom_call.1} parent=47 // pred_check
          %p360 = pneg %p59
        $region50: #{tpu_custom_call.1} parent=47 // pred_check_branch
          %362 = sbr.rel (%p360) target = $region52
        $region51: #{tpu_custom_call.1} parent=47 // pred_region
          %363 = dma.done [#allocation4], 256
        $region52: #{tpu_custom_call.1} parent=47 // pred_fallthru
          _
        %s364 = sand.u32 %s26, 1
        %s365 = scalar_lea.sflag [#allocation7], %s364
        %s366 = sand.u32 %s72, 1
        %s367 = smul.addr %s366, 256
        %s368 = scalar_lea.vmem [#allocation6], %s367
        // Predicated region
        $region53: #{tpu_custom_call.1} parent=47 // pred_check
          %p369 = pneg %p85
        $region54: #{tpu_custom_call.1} parent=47 // pred_check_branch
          %371 = sbr.rel (%p369) target = $region56
        $region55: #{tpu_custom_call.1} parent=47 // pred_region
          %372 = dma.done %s365, 4096
        $region56: #{tpu_custom_call.1} parent=47 // pred_fallthru
          _
        %s373 = sand.u32 %s26, 1
        %s374 = scalar_lea.sflag [#allocation7], %s373
        %s375 = sand.u32 %s124, 1
        %s376 = smul.addr %s375, 256
        %s377 = scalar_lea.vmem [#allocation8], %s376
        // Predicated region
        $region57: #{tpu_custom_call.1} parent=47 // pred_check
          %p378 = pneg %p137
        $region58: #{tpu_custom_call.1} parent=47 // pred_check_branch
          %380 = sbr.rel (%p378) target = $region60
        $region59: #{tpu_custom_call.1} parent=47 // pred_region
          %381 = dma.done %s374, 4096
        $region60: #{tpu_custom_call.1} parent=47 // pred_fallthru
          _
        %s382 = sand.u32 %s176, 1
        %s383 = scalar_lea.sflag [#allocation10], %s382
        %s384 = sand.u32 %s176, 1
        %s385 = smul.addr %s384, 256
        %s386 = scalar_lea.vmem [#allocation9], %s385
        // Predicated region
        $region61: #{tpu_custom_call.1} parent=47 // pred_check
          %p387 = pneg %p189
        $region62: #{tpu_custom_call.1} parent=47 // pred_check_branch
          %389 = sbr.rel (%p387) target = $region64
        $region63: #{tpu_custom_call.1} parent=47 // pred_region
          %390 = dma.done %s383, 4096
        $region64: #{tpu_custom_call.1} parent=47 // pred_fallthru
          _
        %p391 = pneg %p59
        %p392 = pneg %p56
        %s393 = sand.u32 %s26, 1
        %s394 = scalar_lea.sflag [#allocation7], %s393
        %s395 = sand.u32 %s72, 1
        %s396 = smul.addr %s395, 256
        %s397 = scalar_lea.vmem [#allocation6], %s396
        %p398 = pneg %p85
        %p399 = pneg %p82
        %s400 = smul.u32 2, %s31
        %p401 = scmp.lt.s32.totalorder %s400, 3
        %s402 = scalar_select %p401, %s400, 3
        %s403 = scalar_lea.vmem %s2, %s402
        %p404 = pneg %p111
        %p405 = pneg %p108
        %s406 = sand.u32 %s26, 1
        %s407 = scalar_lea.sflag [#allocation7], %s406
        %s408 = sand.u32 %s124, 1
        %s409 = smul.addr %s408, 256
        %s410 = scalar_lea.vmem [#allocation8], %s409
        %p411 = pneg %p137
        %p412 = pneg %p134
        %s413 = smul.u32 2, %s31
        %p414 = scmp.lt.s32.totalorder %s413, 3
        %s415 = scalar_select %p414, %s413, 3
        %s416 = scalar_lea.vmem %s4, %s415
        %p417 = pneg %p163
        %p418 = pneg %p160
        %s419 = sand.u32 %s176, 1
        %s420 = scalar_lea.sflag [#allocation10], %s419
        %s421 = sand.u32 %s176, 1
        %s422 = smul.addr %s421, 256
        %s423 = scalar_lea.vmem [#allocation9], %s422
        %p424 = pneg %p189
        %p425 = pneg %p186
        %p426 = pneg %p210
        %p427 = pneg %p207
        %p428 = pneg %p236
        %p429 = pneg %p233
        %s430 = smul.u32 2, %s30
        %s431 = smul.u32 2, %s31
        %s432 = smul.u32 2, %s31
        %p433 = scmp.lt.s32.totalorder %s432, 3
        %s434 = scalar_select %p433, %s432, 3
        %s435 = scalar_lea.vmem %s2, %s434
        %s436 = smul.u32 2, %s31
        %s437 = smul.u32 2, %s31
        %s438 = smul.u32 2, %s31
        %p439 = scmp.lt.s32.totalorder %s438, 3
        %s440 = scalar_select %p439, %s438, 3
        %s441 = scalar_lea.vmem %s4, %s440
        %s442 = smul.u32 2, %s31
        %s443 = smul.u32 32, %s31
        %s444 = smul.u32 2, %s30
        %p445 = scmp.eq.s32.totalorder %s31, 0
        // Predicated region
        $region65: #{tpu_custom_call.1} parent=47 // pred_check
          %p446 = pneg %p445
        $region66: #{tpu_custom_call.1} parent=47 // pred_check_branch
          %448 = sbr.rel (%p446) target = $region68
        $region67: #{tpu_custom_call.1} parent=47 // pred_region
          %v449 = vld [vmem:[%s6] sm:$0x1]
          %v451 = vlaneseq
          %v452 = vshrl.u32 %v451, 7
          %v453 = vsub.s32 0, %v452
          %v454 = vrot.slane %v449, %v453
          %456 = vst [vmem:[#allocation2] sm:$0xff] %v454
          %457 = vst [vmem:[#allocation2 + $0x8] sm:$0xff] %v454
        $region68: #{tpu_custom_call.1} parent=47 // pred_fallthru
          _
        %v458 = vld [vmem:[#allocation3] sm:$0xff]
        %v459 = vld [vmem:[#allocation3 + $0x8] sm:$0xff]
        %v460 = vld [vmem:[%s368] sm:$0xff]
        %v461 = vld [vmem:[%s368 + $0x8] sm:$0xff]
        %v462 = vld [vmem:[%s368 + $0x10] sm:$0xff]
        %v463 = vld [vmem:[%s368 + $0x18] sm:$0xff]
        %v464 = vld [vmem:[%s368 + $0x20] sm:$0xff]
        %v465 = vld [vmem:[%s368 + $0x28] sm:$0xff]
        %v466 = vld [vmem:[%s368 + $0x30] sm:$0xff]
        %v467 = vld [vmem:[%s368 + $0x38] sm:$0xff]
        %v468 = vld [vmem:[%s368 + $0x40] sm:$0xff]
        %v469 = vld [vmem:[%s368 + $0x48] sm:$0xff]
        %v470 = vld [vmem:[%s368 + $0x50] sm:$0xff]
        %v471 = vld [vmem:[%s368 + $0x58] sm:$0xff]
        %v472 = vld [vmem:[%s368 + $0x60] sm:$0xff]
        %v473 = vld [vmem:[%s368 + $0x68] sm:$0xff]
        %v474 = vld [vmem:[%s368 + $0x70] sm:$0xff]
        %v475 = vld [vmem:[%s368 + $0x78] sm:$0xff]
        %v476 = vld [vmem:[%s368 + $0x80] sm:$0xff]
        %v477 = vld [vmem:[%s368 + $0x88] sm:$0xff]
        %v478 = vld [vmem:[%s368 + $0x90] sm:$0xff]
        %v479 = vld [vmem:[%s368 + $0x98] sm:$0xff]
        %v480 = vld [vmem:[%s368 + $0xa0] sm:$0xff]
        %v481 = vld [vmem:[%s368 + $0xa8] sm:$0xff]
        %v482 = vld [vmem:[%s368 + $0xb0] sm:$0xff]
        %v483 = vld [vmem:[%s368 + $0xb8] sm:$0xff]
        %v484 = vld [vmem:[%s368 + $0xc0] sm:$0xff]
        %v485 = vld [vmem:[%s368 + $0xc8] sm:$0xff]
        %v486 = vld [vmem:[%s368 + $0xd0] sm:$0xff]
        %v487 = vld [vmem:[%s368 + $0xd8] sm:$0xff]
        %v488 = vld [vmem:[%s368 + $0xe0] sm:$0xff]
        %v489 = vld [vmem:[%s368 + $0xe8] sm:$0xff]
        %v490 = vld [vmem:[%s368 + $0xf0] sm:$0xff]
        %v491 = vld [vmem:[%s368 + $0xf8] sm:$0xff]
        %v492 = vld [vmem:[%s377] sm:$0xff]
        %v493 = vld [vmem:[%s377 + $0x8] sm:$0xff]
        %v494 = vld [vmem:[%s377 + $0x10] sm:$0xff]
        %v495 = vld [vmem:[%s377 + $0x18] sm:$0xff]
        %v496 = vld [vmem:[%s377 + $0x20] sm:$0xff]
        %v497 = vld [vmem:[%s377 + $0x28] sm:$0xff]
        %v498 = vld [vmem:[%s377 + $0x30] sm:$0xff]
        %v499 = vld [vmem:[%s377 + $0x38] sm:$0xff]
        %v500 = vld [vmem:[%s377 + $0x40] sm:$0xff]
        %v501 = vld [vmem:[%s377 + $0x48] sm:$0xff]
        %v502 = vld [vmem:[%s377 + $0x50] sm:$0xff]
        %v503 = vld [vmem:[%s377 + $0x58] sm:$0xff]
        %v504 = vld [vmem:[%s377 + $0x60] sm:$0xff]
        %v505 = vld [vmem:[%s377 + $0x68] sm:$0xff]
        %v506 = vld [vmem:[%s377 + $0x70] sm:$0xff]
        %v507 = vld [vmem:[%s377 + $0x78] sm:$0xff]
        %v508 = vld [vmem:[%s377 + $0x80] sm:$0xff]
        %v509 = vld [vmem:[%s377 + $0x88] sm:$0xff]
        %v510 = vld [vmem:[%s377 + $0x90] sm:$0xff]
        %v511 = vld [vmem:[%s377 + $0x98] sm:$0xff]
        %v512 = vld [vmem:[%s377 + $0xa0] sm:$0xff]
        %v513 = vld [vmem:[%s377 + $0xa8] sm:$0xff]
        %v514 = vld [vmem:[%s377 + $0xb0] sm:$0xff]
        %v515 = vld [vmem:[%s377 + $0xb8] sm:$0xff]
        %v516 = vld [vmem:[%s377 + $0xc0] sm:$0xff]
        %v517 = vld [vmem:[%s377 + $0xc8] sm:$0xff]
        %v518 = vld [vmem:[%s377 + $0xd0] sm:$0xff]
        %v519 = vld [vmem:[%s377 + $0xd8] sm:$0xff]
        %v520 = vld [vmem:[%s377 + $0xe0] sm:$0xff]
        %v521 = vld [vmem:[%s377 + $0xe8] sm:$0xff]
        %v522 = vld [vmem:[%s377 + $0xf0] sm:$0xff]
        %v523 = vld [vmem:[%s377 + $0xf8] sm:$0xff]
        %v524 = vld [vmem:[%s386] sm:$0xff]
        %v525 = vld [vmem:[%s386 + $0x8] sm:$0xff]
        %v526 = vld [vmem:[%s386 + $0x10] sm:$0xff]
        %v527 = vld [vmem:[%s386 + $0x18] sm:$0xff]
        %v528 = vld [vmem:[%s386 + $0x20] sm:$0xff]
        %v529 = vld [vmem:[%s386 + $0x28] sm:$0xff]
        %v530 = vld [vmem:[%s386 + $0x30] sm:$0xff]
        %v531 = vld [vmem:[%s386 + $0x38] sm:$0xff]
        %v532 = vld [vmem:[%s386 + $0x40] sm:$0xff]
        %v533 = vld [vmem:[%s386 + $0x48] sm:$0xff]
        %v534 = vld [vmem:[%s386 + $0x50] sm:$0xff]
        %v535 = vld [vmem:[%s386 + $0x58] sm:$0xff]
        %v536 = vld [vmem:[%s386 + $0x60] sm:$0xff]
        %v537 = vld [vmem:[%s386 + $0x68] sm:$0xff]
        %v538 = vld [vmem:[%s386 + $0x70] sm:$0xff]
        %v539 = vld [vmem:[%s386 + $0x78] sm:$0xff]
        %v540 = vld [vmem:[%s386 + $0x80] sm:$0xff]
        %v541 = vld [vmem:[%s386 + $0x88] sm:$0xff]
        %v542 = vld [vmem:[%s386 + $0x90] sm:$0xff]
        %v543 = vld [vmem:[%s386 + $0x98] sm:$0xff]
        %v544 = vld [vmem:[%s386 + $0xa0] sm:$0xff]
        %v545 = vld [vmem:[%s386 + $0xa8] sm:$0xff]
        %v546 = vld [vmem:[%s386 + $0xb0] sm:$0xff]
        %v547 = vld [vmem:[%s386 + $0xb8] sm:$0xff]
        %v548 = vld [vmem:[%s386 + $0xc0] sm:$0xff]
        %v549 = vld [vmem:[%s386 + $0xc8] sm:$0xff]
        %v550 = vld [vmem:[%s386 + $0xd0] sm:$0xff]
        %v551 = vld [vmem:[%s386 + $0xd8] sm:$0xff]
        %v552 = vld [vmem:[%s386 + $0xe0] sm:$0xff]
        %v553 = vld [vmem:[%s386 + $0xe8] sm:$0xff]
        %v554 = vld [vmem:[%s386 + $0xf0] sm:$0xff]
        %v555 = vld [vmem:[%s386 + $0xf8] sm:$0xff]
        %v556 = vld [vmem:[%s435] sm:$0x3]
        %v558 = vlaneseq
        %v559 = vshrl.u32 %v558, 7
        %v560 = vsub.s32 0, %v559
        %v561 = vrot.slane %v556, %v560
        %v562 = vlaneseq
        %v563 = vshrl.u32 %v562, 7
        %v564 = vsub.s32 1, %v563
        %v565 = vrot.slane %v556, %v564
        %568 = vmatprep.subr.mxu0 %v461
        %569 = vmatpush1.msra.mxu0 %v460
        %570 = vmatprep.subr.mxu0 %v463
        %571 = vmatpush1.msra.mxu0 %v462
        %572 = vmatprep.subr.mxu0 %v465
        %573 = vmatpush1.msra.mxu0 %v464
        %574 = vmatprep.subr.mxu0 %v467
        %575 = vmatpush1.msra.mxu0 %v466
        %576 = vmatprep.subr.mxu0 %v469
        %577 = vmatpush1.msra.mxu0 %v468
        %578 = vmatprep.subr.mxu0 %v471
        %579 = vmatpush1.msra.mxu0 %v470
        %580 = vmatprep.subr.mxu0 %v473
        %581 = vmatpush1.msra.mxu0 %v472
        %582 = vmatprep.subr.mxu0 %v475
        %583 = vmatpush1.msra.mxu0 %v474
        %584 = vmatprep.subr.mxu0 %v477
        %585 = vmatpush1.msra.mxu0 %v476
        %586 = vmatprep.subr.mxu0 %v479
        %587 = vmatpush1.msra.mxu0 %v478
        %588 = vmatprep.subr.mxu0 %v481
        %589 = vmatpush1.msra.mxu0 %v480
        %590 = vmatprep.subr.mxu0 %v483
        %591 = vmatpush1.msra.mxu0 %v482
        %592 = vmatprep.subr.mxu0 %v485
        %593 = vmatpush1.msra.mxu0 %v484
        %594 = vmatprep.subr.mxu0 %v487
        %595 = vmatpush1.msra.mxu0 %v486
        %596 = vmatprep.subr.mxu0 %v489
        %597 = vmatpush1.msra.mxu0 %v488
        %598 = vmatprep.subr.mxu0 %v491
        %599 = vmatpush1.msra.mxu0 %v490
        %600 = vmatprep.subr.mxu0 0.0
        %601 = vmatpush1.msra.mxu0 0.0
        %602 = vmatprep.subr.mxu0 0.0
        %603 = vmatpush1.msra.mxu0 0.0
        %604 = vmatprep.subr.mxu0 0.0
        %605 = vmatpush1.msra.mxu0 0.0
        %606 = vmatprep.subr.mxu0 0.0
        %607 = vmatpush1.msra.mxu0 0.0
        %608 = vmatprep.subr.mxu0 0.0
        %609 = vmatpush1.msra.mxu0 0.0
        %610 = vmatprep.subr.mxu0 0.0
        %611 = vmatpush1.msra.mxu0 0.0
        %612 = vmatprep.subr.mxu0 0.0
        %613 = vmatpush1.msra.mxu0 0.0
        %614 = vmatprep.subr.mxu0 0.0
        %615 = vmatpush1.msra.mxu0 0.0
        %616 = vmatprep.subr.mxu0 0.0
        %617 = vmatpush1.msra.mxu0 0.0
        %618 = vmatprep.subr.mxu0 0.0
        %619 = vmatpush1.msra.mxu0 0.0
        %620 = vmatprep.subr.mxu0 0.0
        %621 = vmatpush1.msra.mxu0 0.0
        %622 = vmatprep.subr.mxu0 0.0
        %623 = vmatpush1.msra.mxu0 0.0
        %624 = vmatprep.subr.mxu0 0.0
        %625 = vmatpush1.msra.mxu0 0.0
        %626 = vmatprep.subr.mxu0 0.0
        %627 = vmatpush1.msra.mxu0 0.0
        %628 = vmatprep.subr.mxu0 0.0
        %629 = vmatpush1.msra.mxu0 0.0
        %630 = vmatprep.subr.mxu0 0.0
        %631 = vmatpush1.msra.mxu0 0.0
        %632 = vmatprep.mubr.f32.mxu0 0.0
        %633 = vmatmul.mubr.f32.gmra.mrb[0].mxu0 %v458
        %v634 = vpop.f32.mrb[0].mxu0
        %v635 = vadd.f32 %v561, %v634
        %v636 = vpop.f32.mrb[0].mxu0
        %v637 = vadd.f32 %v565, %v636
        %638 = vmatprep.mubr.f32.mxu0 0.0
        %639 = vmatmul.mubr.f32.gmra.mrb[0].mxu0 %v459
        %v640 = vpop.f32.mrb[0].mxu0
        %v641 = vadd.f32 %v561, %v640
        %v642 = vpop.f32.mrb[0].mxu0
        %v643 = vadd.f32 %v565, %v642
        %644 = vdwg.mxu0
        %v645 = vld [vmem:[%s441] sm:$0x3]
        %v647 = vlaneseq
        %v648 = vshrl.u32 %v647, 7
        %v649 = vsub.s32 0, %v648
        %v650 = vrot.slane %v645, %v649
        %v651 = vlaneseq
        %v652 = vshrl.u32 %v651, 7
        %v653 = vsub.s32 1, %v652
        %v654 = vrot.slane %v645, %v653
        %657 = vmatprep.subr.mxu0 %v493
        %658 = vmatpush1.msra.mxu0 %v492
        %659 = vmatprep.subr.mxu0 %v495
        %660 = vmatpush1.msra.mxu0 %v494
        %661 = vmatprep.subr.mxu0 %v497
        %662 = vmatpush1.msra.mxu0 %v496
        %663 = vmatprep.subr.mxu0 %v499
        %664 = vmatpush1.msra.mxu0 %v498
        %665 = vmatprep.subr.mxu0 %v501
        %666 = vmatpush1.msra.mxu0 %v500
        %667 = vmatprep.subr.mxu0 %v503
        %668 = vmatpush1.msra.mxu0 %v502
        %669 = vmatprep.subr.mxu0 %v505
        %670 = vmatpush1.msra.mxu0 %v504
        %671 = vmatprep.subr.mxu0 %v507
        %672 = vmatpush1.msra.mxu0 %v506
        %673 = vmatprep.subr.mxu0 %v509
        %674 = vmatpush1.msra.mxu0 %v508
        %675 = vmatprep.subr.mxu0 %v511
        %676 = vmatpush1.msra.mxu0 %v510
        %677 = vmatprep.subr.mxu0 %v513
        %678 = vmatpush1.msra.mxu0 %v512
        %679 = vmatprep.subr.mxu0 %v515
        %680 = vmatpush1.msra.mxu0 %v514
        %681 = vmatprep.subr.mxu0 %v517
        %682 = vmatpush1.msra.mxu0 %v516
        %683 = vmatprep.subr.mxu0 %v519
        %684 = vmatpush1.msra.mxu0 %v518
        %685 = vmatprep.subr.mxu0 %v521
        %686 = vmatpush1.msra.mxu0 %v520
        %687 = vmatprep.subr.mxu0 %v523
        %688 = vmatpush1.msra.mxu0 %v522
        %689 = vmatprep.subr.mxu0 0.0
        %690 = vmatpush1.msra.mxu0 0.0
        %691 = vmatprep.subr.mxu0 0.0
        %692 = vmatpush1.msra.mxu0 0.0
        %693 = vmatprep.subr.mxu0 0.0
        %694 = vmatpush1.msra.mxu0 0.0
        %695 = vmatprep.subr.mxu0 0.0
        %696 = vmatpush1.msra.mxu0 0.0
        %697 = vmatprep.subr.mxu0 0.0
        %698 = vmatpush1.msra.mxu0 0.0
        %699 = vmatprep.subr.mxu0 0.0
        %700 = vmatpush1.msra.mxu0 0.0
        %701 = vmatprep.subr.mxu0 0.0
        %702 = vmatpush1.msra.mxu0 0.0
        %703 = vmatprep.subr.mxu0 0.0
        %704 = vmatpush1.msra.mxu0 0.0
        %705 = vmatprep.subr.mxu0 0.0
        %706 = vmatpush1.msra.mxu0 0.0
        %707 = vmatprep.subr.mxu0 0.0
        %708 = vmatpush1.msra.mxu0 0.0
        %709 = vmatprep.subr.mxu0 0.0
        %710 = vmatpush1.msra.mxu0 0.0
        %711 = vmatprep.subr.mxu0 0.0
        %712 = vmatpush1.msra.mxu0 0.0
        %713 = vmatprep.subr.mxu0 0.0
        %714 = vmatpush1.msra.mxu0 0.0
        %715 = vmatprep.subr.mxu0 0.0
        %716 = vmatpush1.msra.mxu0 0.0
        %717 = vmatprep.subr.mxu0 0.0
        %718 = vmatpush1.msra.mxu0 0.0
        %719 = vmatprep.subr.mxu0 0.0
        %720 = vmatpush1.msra.mxu0 0.0
        %721 = vmatprep.mubr.f32.mxu0 0.0
        %722 = vmatmul.mubr.f32.gmra.mrb[0].mxu0 %v458
        %v723 = vpop.f32.mrb[0].mxu0
        %v724 = vadd.f32 %v650, %v723
        %v725 = vpop.f32.mrb[0].mxu0
        %v726 = vadd.f32 %v654, %v725
        %727 = vmatprep.mubr.f32.mxu0 0.0
        %728 = vmatmul.mubr.f32.gmra.mrb[0].mxu0 %v459
        %v729 = vpop.f32.mrb[0].mxu0
        %v730 = vadd.f32 %v650, %v729
        %v731 = vpop.f32.mrb[0].mxu0
        %v732 = vadd.f32 %v654, %v731
        %733 = vdwg.mxu0
        %v734 = vxor.u32 %v724, 2147483648
        %v735 = vxor.u32 %v726, 2147483648
        %v736 = vxor.u32 %v730, 2147483648
        %v737 = vxor.u32 %v732, 2147483648
        %v738 = vmul.f32 %v734, 1.442695
        %v739 = vpow.pop %v738
        %v740 = vmul.f32 %v735, 1.442695
        %v741 = vpow.pop %v740
        %v742 = vmul.f32 %v736, 1.442695
        %v743 = vpow.pop %v742
        %v744 = vmul.f32 %v737, 1.442695
        %v745 = vpow.pop %v744
        %v746 = vadd.f32 %v739, 1.0
        %v747 = vadd.f32 %v741, 1.0
        %v748 = vadd.f32 %v743, 1.0
        %v749 = vadd.f32 %v745, 1.0
        %v750 = vrcp.pop %v746
        %v751 = vmul.f32 1.0, %v750
        %v752 = vrcp.pop %v747
        %v753 = vmul.f32 1.0, %v752
        %v754 = vrcp.pop %v748
        %v755 = vmul.f32 1.0, %v754
        %v756 = vrcp.pop %v749
        %v757 = vmul.f32 1.0, %v756
        %v758 = vmul.f32 %v724, %v751
        %v759 = vmul.f32 %v726, %v753
        %v760 = vmul.f32 %v730, %v755
        %v761 = vmul.f32 %v732, %v757
        %v762 = vmul.f32 %v635, %v758
        %v763 = vmul.f32 %v637, %v759
        %v764 = vmul.f32 %v641, %v760
        %v765 = vmul.f32 %v643, %v761
        %v766 = vld [vmem:[#allocation2] sm:$0xff]
        %v767 = vld [vmem:[#allocation2 + $0x8] sm:$0xff]
        %768 = vmatprep.subr.mxu0 0.0
        %769 = vmatpush1.msra.mxu0 %v524
        %770 = vmatprep.subr.mxu0 0.0
        %771 = vmatpush1.msra.mxu0 %v525
        %772 = vmatprep.subr.mxu0 0.0
        %773 = vmatpush1.msra.mxu0 %v526
        %774 = vmatprep.subr.mxu0 0.0
        %775 = vmatpush1.msra.mxu0 %v527
        %776 = vmatprep.subr.mxu0 0.0
        %777 = vmatpush1.msra.mxu0 %v528
        %778 = vmatprep.subr.mxu0 0.0
        %779 = vmatpush1.msra.mxu0 %v529
        %780 = vmatprep.subr.mxu0 0.0
        %781 = vmatpush1.msra.mxu0 %v530
        %782 = vmatprep.subr.mxu0 0.0
        %783 = vmatpush1.msra.mxu0 %v531
        %784 = vmatprep.subr.mxu0 0.0
        %785 = vmatpush1.msra.mxu0 %v532
        %786 = vmatprep.subr.mxu0 0.0
        %787 = vmatpush1.msra.mxu0 %v533
        %788 = vmatprep.subr.mxu0 0.0
        %789 = vmatpush1.msra.mxu0 %v534
        %790 = vmatprep.subr.mxu0 0.0
        %791 = vmatpush1.msra.mxu0 %v535
        %792 = vmatprep.subr.mxu0 0.0
        %793 = vmatpush1.msra.mxu0 %v536
        %794 = vmatprep.subr.mxu0 0.0
        %795 = vmatpush1.msra.mxu0 %v537
        %796 = vmatprep.subr.mxu0 0.0
        %797 = vmatpush1.msra.mxu0 %v538
        %798 = vmatprep.subr.mxu0 0.0
        %799 = vmatpush1.msra.mxu0 %v539
        %800 = vmatprep.subr.mxu0 0.0
        %801 = vmatpush1.msra.mxu0 %v540
        %802 = vmatprep.subr.mxu0 0.0
        %803 = vmatpush1.msra.mxu0 %v541
        %804 = vmatprep.subr.mxu0 0.0
        %805 = vmatpush1.msra.mxu0 %v542
        %806 = vmatprep.subr.mxu0 0.0
        %807 = vmatpush1.msra.mxu0 %v543
        %808 = vmatprep.subr.mxu0 0.0
        %809 = vmatpush1.msra.mxu0 %v544
        %810 = vmatprep.subr.mxu0 0.0
        %811 = vmatpush1.msra.mxu0 %v545
        %812 = vmatprep.subr.mxu0 0.0
        %813 = vmatpush1.msra.mxu0 %v546
        %814 = vmatprep.subr.mxu0 0.0
        %815 = vmatpush1.msra.mxu0 %v547
        %816 = vmatprep.subr.mxu0 0.0
        %817 = vmatpush1.msra.mxu0 %v548
        %818 = vmatprep.subr.mxu0 0.0
        %819 = vmatpush1.msra.mxu0 %v549
        %820 = vmatprep.subr.mxu0 0.0
        %821 = vmatpush1.msra.mxu0 %v550
        %822 = vmatprep.subr.mxu0 0.0
        %823 = vmatpush1.msra.mxu0 %v551
        %824 = vmatprep.subr.mxu0 0.0
        %825 = vmatpush1.msra.mxu0 %v552
        %826 = vmatprep.subr.mxu0 0.0
        %827 = vmatpush1.msra.mxu0 %v553
        %828 = vmatprep.subr.mxu0 0.0
        %829 = vmatpush1.msra.mxu0 %v554
        %830 = vmatprep.subr.mxu0 0.0
        %831 = vmatpush1.msra.mxu0 %v555
        %832 = vmatprep.mubr.f32.mxu0 %v763
        %833 = vmatmul.mubr.f32.gmra.mrb[0].mxu0 %v762
        %v834 = vpop.f32.mrb[0].mxu0
        %v835 = vadd.f32 0.0, %v834
        %v836 = vpop.f32.mrb[0].mxu0
        %837 = vmatprep.mubr.f32.mxu0 %v765
        %838 = vmatmul.mubr.f32.gmra.mrb[0].mxu0 %v764
        %v839 = vpop.f32.mrb[0].mxu0
        %v840 = vadd.f32 0.0, %v839
        %v841 = vpop.f32.mrb[0].mxu0
        %842 = vdwg.mxu0
        %v843 = vadd.f32 %v766, %v835
        %v844 = vadd.f32 %v767, %v840
        %845 = vst [vmem:[#allocation2] sm:$0xff] %v843
        %846 = vst [vmem:[#allocation2 + $0x8] sm:$0xff] %v844
        %p847 = scmp.eq.s32.totalorder %s31, 1
        // Predicated region
        $region69: #{tpu_custom_call.1} parent=47 // pred_check
          %p848 = pneg %p847
        $region70: #{tpu_custom_call.1} parent=47 // pred_check_branch
          %850 = sbr.rel (%p848) target = $region72
        $region71: #{tpu_custom_call.1} parent=47 // pred_region
          %v851 = vld [vmem:[#allocation2] sm:$0xff]
          %v852 = vld [vmem:[#allocation2 + $0x8] sm:$0xff]
          %853 = vst [vmem:[#allocation11] sm:$0xff] %v851
          %854 = vst [vmem:[#allocation11 + $0x8] sm:$0xff] %v852
        $region72: #{tpu_custom_call.1} parent=47 // pred_fallthru
          _
        // Predicated region
        $region73: #{tpu_custom_call.1} parent=47 // pred_check
          %p855 = pneg %p233
        $region74: #{tpu_custom_call.1} parent=47 // pred_check_branch
          %857 = sbr.rel (%p855) target = $region76
        $region75: #{tpu_custom_call.1} parent=47 // pred_region
          %s858 = smul.u32 2, %s30
          %s860 = ssub.s32 256, 256
          %861 = vsyncadd [#allocation5], %s860
          %s862 = smul.addr %s858, 128
          %s863 = scalar_lea.hbm %s7, %s862
          %s864 = sshll.u32 [#allocation11], 4
          %s865 = int_to_ptr.vmem [resolvable:$true] %s864
          %870 = dma.vmem_to_hbm [thread:$0]  %s865, 256, %s863, [#allocation5], 128, 128, 8
        $region76: #{tpu_custom_call.1} parent=47 // pred_fallthru
          _
        // Predicated region
        $region77: #{tpu_custom_call.1} parent=47 // pred_check
          %p871 = pneg %p233
        $region78: #{tpu_custom_call.1} parent=47 // pred_check_branch
          %873 = sbr.rel (%p871) target = $region80
        $region79: #{tpu_custom_call.1} parent=47 // pred_region
          %874 = dma.done [#allocation5], 256
        $region80: #{tpu_custom_call.1} parent=47 // pred_fallthru
          _
      $region48: #{tpu_custom_call.1} parent=5 // pred_fallthru
        _
      %p875 = scmp.le.s32.totalorder 2, %s21
      // Predicated region
      $region81: #{tpu_custom_call.1} parent=5 // pred_check
        %p876 = pneg %p875
      $region82: #{tpu_custom_call.1} parent=5 // pred_check_branch
        %878 = sbr.rel (%p876) target = $region84
      $region83: #{tpu_custom_call.1} parent=5 // pred_region
        %s879 = ssub.s32 %s21, 2
      $region84: #{tpu_custom_call.1} parent=5 // pred_fallthru
        _
    $region6: #{tpu_custom_call.1} parent=1 // loop_footer
      %s25 = sadd.s32 1, %s21
    $region7: #{tpu_custom_call.1} parent=1 // loop_footer_branch
      %20 = sbr.rel target = $region3
    $region8: #{tpu_custom_call.1} parent=1 // loop_exit
      _
    %880 = vsyncpa [#allocation4], 1
    %s881 = scalar_lea.sflag [#allocation4], 1
    %882 = vsyncpa %s881, 1
    %883 = vsyncpa [#allocation7], 1
    %s884 = scalar_lea.sflag [#allocation7], 1
    %885 = vsyncpa %s884, 1
    %886 = vsyncpa [#allocation10], 1
    %s887 = scalar_lea.sflag [#allocation10], 1
    %888 = vsyncpa %s887, 1
    %889 = vsyncpa [#allocation5], 1
    %s890 = scalar_lea.sflag [#allocation5], 1
    %891 = vsyncpa %s890, 1

</llo_original>
